<compile_context>
chip_gen: v5e
topology: v5e:2x2
jax: 0.10.0
libtpu: 0.0.40
codegen_flags: <defaults>
</compile_context>

<pallas_src>
import functools

import jax
import jax.numpy as jnp
from jax.experimental import pallas as pl
from jax.experimental.pallas import tpu as pltpu


def _ce_partial_kernel(x_ref, y_ref, out_ref, *, tm, m_total):
    # x_ref: (TM, C) f32 logits tile, y_ref: (TM, 1) i32 labels tile,
    # out_ref: (8, 128) f32 lane-dense partial-sum block for this tile.
    i = pl.program_id(0)

    x = x_ref[...]                                              # (TM, C)
    y = y_ref[...]                                              # (TM, 1)

    row = jax.lax.broadcasted_iota(jnp.int32, x.shape, 0) + i * tm
    col = jax.lax.broadcasted_iota(jnp.int32, x.shape, 1)
    valid = row < m_total                                       # mask padded rows

    # Partial global-softmax denominator: sum(exp(x)) over this tile.
    s_exp = jnp.sum(jnp.where(valid, jnp.exp(x), 0.0))
    # Partial sum of picked raw logits x[i, y[i]] (one-hot select, one reduce).
    s_pick = jnp.sum(jnp.where(valid & (col == y), x, 0.0))

    # Lane-dense store: lane 0 = partial exp-sum, lane 1 = partial pick-sum.
    lane = jax.lax.broadcasted_iota(jnp.int32, out_ref.shape, 1)
    out_ref[...] = jnp.where(lane == 0, s_exp,
                             jnp.where(lane == 1, s_pick, 0.0))


def cross_entropy_loss(x, y, *, tm=None):
    """x: (M, C) float32 logits, y: (M,) int labels -> scalar float32 loss."""
    M, C = x.shape
    x = x.astype(jnp.float32)
    y2 = y.reshape(M, 1).astype(jnp.int32)

    # Pad the batch dim up to a multiple of 8 (sublane); padded rows are masked
    # inside the kernel via m_total.
    pad = (-M) % 8
    if pad:
        x = jnp.pad(x, ((0, pad), (0, 0)))
        y2 = jnp.pad(y2, ((0, pad), (0, 0)))
    m_padded = M + pad

    # Tile rows so one x block is ~<= 4 MiB (double-buffered ~8 MiB: fits the
    # default scoped VMEM on v5e/v6e/v7x), but never larger than the array.
    if tm is None:
        target_rows = max(8, ((4 << 20) // (C * 4)) // 8 * 8)
        tm = min(target_rows, m_padded)
    else:
        tm = min(((tm + 7) // 8) * 8, m_padded)
    n_tiles = pl.cdiv(m_padded, tm)

    cost = pl.CostEstimate(
        flops=3 * M * C,
        transcendentals=M * C,
        bytes_accessed=M * C * 4 + M * 4 + n_tiles * 8 * 128 * 4,
    )

    # Only raise the scoped-VMEM limit if the (rare) minimum-tile working set
    # would not fit the smallest default (v5e: 16 MiB).
    compiler_kwargs = dict(dimension_semantics=("parallel",))
    vmem_needed = 2 * (tm * C * 4 + tm * 4) + 2 * 8 * 128 * 4
    if vmem_needed > 12 * 1024 * 1024:
        compiler_kwargs["vmem_limit_bytes"] = int(
            min(vmem_needed + (4 << 20), 56 * 1024 * 1024))

    partials = pl.pallas_call(
        functools.partial(_ce_partial_kernel, tm=tm, m_total=M),
        out_shape=jax.ShapeDtypeStruct((n_tiles * 8, 128), jnp.float32),
        grid=(n_tiles,),
        in_specs=[
            pl.BlockSpec((tm, C), lambda i: (i, 0)),
            pl.BlockSpec((tm, 1), lambda i: (i, 0)),
        ],
        out_specs=pl.BlockSpec((8, 128), lambda i: (i, 0)),
        compiler_params=pltpu.CompilerParams(**compiler_kwargs),
        cost_estimate=cost,
    )(x, y2)

    # Combine per-tile partials: two scalar sums, one log, one divide.
    p = partials.reshape(n_tiles, 8, 128)[:, 0, :]
    s_exp = jnp.sum(p[:, 0])
    s_pick = jnp.sum(p[:, 1])
    # loss = log(sum(exp(x))) - mean(picked logits)  (== original module's loss)
    return jnp.log(s_exp) - s_pick / jnp.float32(M)


def _reference(x, y):
    # Pure-JAX reference replicating the PyTorch module exactly.
    m = y.shape[0]
    exps = jnp.exp(x)
    p = exps / jnp.sum(exps)
    picked = p[jnp.arange(m), y]
    return jnp.sum(-jnp.log(picked)) / m


if __name__ == "__main__":
    key = jax.random.PRNGKey(0)
    kx, ky = jax.random.split(key)

    # Case 1: small shape consistent with the module (batch=8, classes=128).
    M, C = 8, 128
    x = jax.random.normal(kx, (M, C), dtype=jnp.float32)
    y = jax.random.randint(ky, (M,), 0, C, dtype=jnp.int32)

    loss = cross_entropy_loss(x, y)
    jax.block_until_ready(loss)
    ref = _reference(x, y)
    assert jnp.allclose(loss, ref, rtol=1e-5, atol=1e-5), (loss, ref)

    # Case 2: exercises batch tiling + partial-tile masking (M not a multiple
    # of the forced tile size, odd class count).
    M2, C2 = 20, 40
    x2 = jax.random.normal(kx, (M2, C2), dtype=jnp.float32)
    y2 = jax.random.randint(ky, (M2,), 0, C2, dtype=jnp.int32)

    loss2 = cross_entropy_loss(x2, y2, tm=8)
    jax.block_until_ready(loss2)
    ref2 = _reference(x2, y2)
    assert jnp.allclose(loss2, ref2, rtol=1e-5, atol=1e-5), (loss2, ref2)

    print("KERNEL_OK")
</pallas_src>

<mosaic_0001>
module attributes {stable_mosaic.version = 11 : i64} {
  func.func @_ce_partial_kernel(%arg0: i32, %arg1: memref<8x128xf32, #tpu.memory_space<vmem>>, %arg2: memref<8x1xi32, #tpu.memory_space<vmem>>, %arg3: memref<8x128xf32, #tpu.memory_space<vmem>>) attributes {dimension_semantics = [#tpu.dimension_semantics<parallel>], iteration_bounds = array<i64: 1>, scalar_prefetch = 0 : i64, scratch_operands = 0 : i64, tpu.core_type = #tpu.core_type<tc>, window_params = [{transform_indices = @transform_0, window_bounds = array<i64: 8, 128>}, {transform_indices = @transform_1, window_bounds = array<i64: 8, 1>}, {transform_indices = @transform_2, window_bounds = array<i64: 8, 128>}]} {
    %c0 = arith.constant 0 : index
    %c0_0 = arith.constant 0 : index
    %0 = vector.load %arg1[%c0, %c0_0] : memref<8x128xf32, #tpu.memory_space<vmem>>, vector<8x128xf32>
    %c0_1 = arith.constant 0 : index
    %c0_2 = arith.constant 0 : index
    %1 = vector.load %arg2[%c0_1, %c0_2] : memref<8x1xi32, #tpu.memory_space<vmem>>, vector<8x1xi32>
    %2 = tpu.iota {dimensions = array<i32: 0>} : vector<8x128xi32>
    %c8_i32 = arith.constant 8 : i32
    %3 = arith.muli %arg0, %c8_i32 : i32
    %4 = vector.broadcast %3 : i32 to vector<8x128xi32>
    %5 = arith.addi %2, %4 : vector<8x128xi32>
    %6 = tpu.iota {dimensions = array<i32: 1>} : vector<8x128xi32>
    %c8_i32_3 = arith.constant 8 : i32
    %7 = vector.broadcast %c8_i32_3 : i32 to vector<8x128xi32>
    %8 = arith.cmpi slt, %5, %7 : vector<8x128xi32>
    %9 = math.exp %0 : vector<8x128xf32>
    %cst = arith.constant 0.000000e+00 : f32
    %10 = vector.broadcast %cst : f32 to vector<8x128xf32>
    %11 = arith.select %8, %9, %10 : vector<8x128xi1>, vector<8x128xf32>
    %12 = vector.shape_cast %11 : vector<8x128xf32> to vector<1x8x128xf32>
    %cst_4 = arith.constant dense<0.000000e+00> : vector<1xf32>
    %13 = vector.multi_reduction <add>, %12, %cst_4 [1, 2] : vector<1x8x128xf32> to vector<1xf32>
    %14 = vector.shape_cast %13 : vector<1xf32> to vector<1x1x1xf32>
    %15 = vector.extract %14[0, 0, 0] : f32 from vector<1x1x1xf32>
    %16 = vector.broadcast %1 : vector<8x1xi32> to vector<8x128xi32>
    %17 = arith.cmpi eq, %6, %16 : vector<8x128xi32>
    %18 = arith.andi %8, %17 : vector<8x128xi1>
    %cst_5 = arith.constant 0.000000e+00 : f32
    %19 = vector.broadcast %cst_5 : f32 to vector<8x128xf32>
    %20 = arith.select %18, %0, %19 : vector<8x128xi1>, vector<8x128xf32>
    %21 = vector.shape_cast %20 : vector<8x128xf32> to vector<1x8x128xf32>
    %cst_6 = arith.constant dense<0.000000e+00> : vector<1xf32>
    %22 = vector.multi_reduction <add>, %21, %cst_6 [1, 2] : vector<1x8x128xf32> to vector<1xf32>
    %23 = vector.shape_cast %22 : vector<1xf32> to vector<1x1x1xf32>
    %24 = vector.extract %23[0, 0, 0] : f32 from vector<1x1x1xf32>
    %25 = tpu.iota {dimensions = array<i32: 1>} : vector<8x128xi32>
    %c0_i32 = arith.constant 0 : i32
    %26 = vector.broadcast %c0_i32 : i32 to vector<8x128xi32>
    %27 = arith.cmpi eq, %25, %26 : vector<8x128xi32>
    %c1_i32 = arith.constant 1 : i32
    %28 = vector.broadcast %c1_i32 : i32 to vector<8x128xi32>
    %29 = arith.cmpi eq, %25, %28 : vector<8x128xi32>
    %cst_7 = arith.constant 0.000000e+00 : f32
    %30 = vector.broadcast %24 : f32 to vector<8x128xf32>
    %31 = vector.broadcast %cst_7 : f32 to vector<8x128xf32>
    %32 = arith.select %29, %30, %31 : vector<8x128xi1>, vector<8x128xf32>
    %33 = vector.broadcast %15 : f32 to vector<8x128xf32>
    %34 = arith.select %27, %33, %32 : vector<8x128xi1>, vector<8x128xf32>
    %c0_8 = arith.constant 0 : index
    %c0_9 = arith.constant 0 : index
    %35 = vector.load %arg3[%c0_8, %c0_9] : memref<8x128xf32, #tpu.memory_space<vmem>>, vector<8x128xf32>
    tpu.vector_store %arg3[%c0_8, %c0_9], %34 {strides = array<i32>} : memref<8x128xf32, #tpu.memory_space<vmem>>, vector<8x128xf32>,
    return
  }
  func.func @transform_0(%arg0: i32) -> (i32, i32) {
    %c0_i32 = arith.constant 0 : i32
    %c0_i32_0 = arith.constant 0 : i32
    return %arg0, %c0_i32 : i32, i32
  }
  func.func @transform_1(%arg0: i32) -> (i32, i32) {
    %c0_i32 = arith.constant 0 : i32
    %c0_i32_0 = arith.constant 0 : i32
    return %arg0, %c0_i32 : i32, i32
  }
  func.func @transform_2(%arg0: i32) -> (i32, i32) {
    %c0_i32 = arith.constant 0 : i32
    %c0_i32_0 = arith.constant 0 : i32
    return %arg0, %c0_i32 : i32, i32
  }
}

</mosaic_0001>

<llo_original>
// kernel: tpu_custom_call.1
$region0: #{tpu_custom_call.1}
  #allocation0 [shape = 'u32[]', space=smem, size = 0x4, offset = 0x4, fixed_abs, tag = 'smem constant byte address 0x4 - core index']
  #allocation1 [shape = 'u32[72,128]{1,0:T(1,128)}', space=vmem, size = 0x9000, scoped, tag = 'internal scratch']
  %s0 = inlined_call_operand.vmem [shape: f32[8,128], index: 0, kind: input, shape index: {}]
  %s1 = inlined_call_operand.vmem [shape: s32[8,1], index: 1, kind: input, shape index: {}]
  %s2 = inlined_call_operand.hbm [shape: f32[8,128], index: 2, kind: output, shape index: {}]
  %s3 = sld [smem:[#allocation0]]
  $region18: #{tpu_custom_call.1} parent=0
    _
  %s5 = ssub.s32 1, %s3
  %s6 = scalar_select 0, %s5, %s3
  $region1: #{tpu_custom_call.1} parent=0
    #allocation2 [shape = 'u8[4096]{0}', space=vmem, size = 0x1000, scoped, tag = 'output window, operand 0, single buffered']
    #allocation3 [shape = 's32[1]{0}', space=sflag, size = 0x4, scoped, tag = 'scoped memory for tpu_custom_call.1']
    %7 = vsyncpa [#allocation3], 0
    // Predicated region
    $region2: #{tpu_custom_call.1} parent=1 // pred_check
      _
    $region3: #{tpu_custom_call.1} parent=1 // pred_check_branch
      %9 = sbr.rel (0) target = $region5
    $region4: #{tpu_custom_call.1} parent=1 // pred_region
      _
    $region5: #{tpu_custom_call.1} parent=1 // pred_fallthru
      _
    // Predicated region
    $region6: #{tpu_custom_call.1} parent=1 // pred_check
      _
    $region7: #{tpu_custom_call.1} parent=1 // pred_check_branch
      %11 = sbr.rel (0) target = $region9
    $region8: #{tpu_custom_call.1} parent=1 // pred_region
      _
    $region9: #{tpu_custom_call.1} parent=1 // pred_fallthru
      _
    %v12 = vld [vmem:[%s0] sm:$0xff]
    %v13 = vld [vmem:[%s1] sm:$0xff]
    %v14 = vlaneseq
    %v15 = vshrl.u32 %v14, 7
    %s16 = smul.u32 0, 8
    %v17 = vstv %s16
    %v18 = vadd.s32 %v15, %v17
    %v19 = vlaneseq
    %v20 = vand.u32 %v19, 127
    %vm21 = vcmp.lt.s32.totalorder %v18, 8
    %v22 = vmul.f32 %v12, 1.442695
    %v23 = vpow.pop %v22
    %v24 = vsel %vm21, %v23, 0.0
    %25 = vadd.xlane.f32.xlu0 %v24
    %v26 = vpop.xlane.xlu0 %25
    %v27 = vrot.slane %v26, 4
    %v28 = vadd.f32 %v26, %v27
    %v29 = vrot.slane %v28, 2
    %v30 = vadd.f32 %v28, %v29
    %v31 = vrot.slane %v30, 1
    %v32 = vadd.f32 %v30, %v31
    %s33 = vtos %v32
    %34 = vset.pattern.permute.xlu0 0
    %35 = vperm.xlu0 %34, %v13
    %v36 = vpop.permute.xlu0 %35
    %vm37 = vcmp.eq.s32.totalorder %v20, %v36
    %vm38 = vmand %vm21, %vm37
    %v39 = vsel %vm38, %v12, 0.0
    %40 = vadd.xlane.f32.xlu0 %v39
    %v41 = vpop.xlane.xlu0 %40
    %v42 = vrot.slane %v41, 4
    %v43 = vadd.f32 %v41, %v42
    %v44 = vrot.slane %v43, 2
    %v45 = vadd.f32 %v43, %v44
    %v46 = vrot.slane %v45, 1
    %v47 = vadd.f32 %v45, %v46
    %s48 = vtos %v47
    %vm49 = vcmp.eq.s32.totalorder %v20, 0
    %vm50 = vcmp.eq.s32.totalorder %v20, 1
    %v51 = vstv %s48
    %v52 = vsel %vm50, %v51, 0.0
    %v53 = vstv %s33
    %v54 = vsel %vm49, %v53, %v52
    %55 = vst [vmem:[#allocation2] sm:$0xff] %v54
    // Predicated region
    $region10: #{tpu_custom_call.1} parent=1 // pred_check
      _
    $region11: #{tpu_custom_call.1} parent=1 // pred_check_branch
      %57 = sbr.rel (0) target = $region13
    $region12: #{tpu_custom_call.1} parent=1 // pred_region
      %59 = vsyncadd [#allocation3], 0
      %s61 = sshll.u32 [#allocation2], 4
      %s62 = int_to_ptr.vmem [resolvable:$true] %s61
      %s63 = sshll.u32 %s2, 4
      %s64 = int_to_ptr.hbm [resolvable:$true] %s63
      %66 = dma.vmem_to_hbm [thread:$0]  %s62, 128, %s64, [#allocation3]
    $region13: #{tpu_custom_call.1} parent=1 // pred_fallthru
      _
    // Predicated region
    $region14: #{tpu_custom_call.1} parent=1 // pred_check
      _
    $region15: #{tpu_custom_call.1} parent=1 // pred_check_branch
      %68 = sbr.rel (0) target = $region17
    $region16: #{tpu_custom_call.1} parent=1 // pred_region
      %70 = dma.done [#allocation3], 128
    $region17: #{tpu_custom_call.1} parent=1 // pred_fallthru
      _
    %71 = vsyncpa [#allocation3], 1

</llo_original>
